<compile_context>
chip_gen: v5e
topology: v5e:2x2
jax: 0.10.0
libtpu: 0.0.40
codegen_flags: <defaults>
</compile_context>

<pallas_src>
import functools

import jax
import jax.numpy as jnp
from jax.experimental import pallas as pl
from jax.experimental.pallas import tpu as pltpu

_LANE = 128


def _floor_lane(v):
    return (v // _LANE) * _LANE


def _largest_divisor_leq(n, cap):
    best = 1
    for d in range(1, min(n, cap) + 1):
        if n % d == 0:
            best = d
    return best


def _derive_budgets():
    """Generation-aware VMEM budgets (v5e/v6e: 128 MiB physical, v7x: 64 MiB)."""
    phys = 64 * 1024 * 1024                       # conservative fallback (= v7x)
    try:
        phys = int(pltpu.get_tpu_info().vmem_capacity_bytes)
    except Exception:
        pass
    vmem_limit = int(phys * 0.68)                 # ~87 MiB on 128-MiB parts, ~44 MiB on v7x
    tile_budget = int(phys * 0.42)                # ~54 MiB / ~27 MiB for 2x-buffered x+out
    return vmem_limit, tile_budget


def _choose_tiles(C, T, B, HW, itemsize, budget):
    """Pick (channel block cb, hw tile) for multi-MiB, budget-fitting tiles."""
    # Channel block: feed the MXU a ~256-deep contraction (cb*T), but keep a
    # 512-lane hw tile affordable in VMEM even on v7x's 64 MiB.
    cb_mxu = max(1, 256 // max(T, 1))
    cb_vmem = max(1, budget // (2 * (T + B) * itemsize * 4 * _LANE))
    cb = _largest_divisor_leq(C, max(1, min(cb_mxu, cb_vmem)))

    # hw tile: as many lanes as the double-buffered x + out budget allows.
    per_lane = 2 * cb * (T + B) * itemsize
    cap_lanes = max(budget // per_lane, _LANE)
    if HW <= cap_lanes:
        hw_tile = HW                              # whole-HW block (legal even if % 128 != 0)
    else:
        hw_tile = max(4 * _LANE, _floor_lane(cap_lanes))   # >= 512-lane floor
        if hw_tile >= HW:
            hw_tile = HW
    return cb, hw_tile


def _choose_hw_chunk(bb, hw_tile):
    """In-kernel hw chunk: keep the f32 result chunk (bb x chunk) ~<= 32 vregs."""
    cap = max(_LANE, _floor_lane((32 * 1024) // max(bb, 1)))
    return hw_tile if hw_tile <= cap else cap


def _x_block_spec(block_shape, index_map, deep_buffer):
    if deep_buffer:
        try:
            return pl.BlockSpec(block_shape, index_map, pipeline_mode=pl.Buffered(3))
        except Exception:
            pass
    return pl.BlockSpec(block_shape, index_map)


def _temporal_sampling_kernel(w_ref, x_ref, o_ref, xs_ref, *, hw_tile, hw_chunk,
                              hw_total, needs_mask):
    """One grid point = (batch n, channel block c, hw block j).

    w_ref  : [1, cb*B, cb*T]        block-diagonal Gaussian weights for batch n
    x_ref  : [1, 1, cb*T, hw_tile]  input tile (channel block folded into rows)
    o_ref  : [1, 1, cb*B, hw_tile]  resampled output tile
    xs_ref : [1, 1, cb*T, 1]        f32 accumulator: sum over hw of x (mask path)
    """
    j = pl.program_id(2)

    @pl.when(j == 0)
    def _():
        xs_ref[...] = jnp.zeros_like(xs_ref)

    def do_chunk(off, size):
        w = w_ref[0]                                        # [cb*B, cb*T]
        xc = x_ref[0, 0, :, pl.ds(off, size)]               # [cb*T, size]
        res = jnp.dot(w, xc, preferred_element_type=jnp.float32)
        o_ref[0, 0, :, pl.ds(off, size)] = res.astype(o_ref.dtype)
        # hw-sum of x for the mask: XLU cross-lane reduce, off the MXU path.
        if needs_mask:
            lane = jax.lax.broadcasted_iota(jnp.int32, xc.shape, 1)
            valid = hw_total - (j * hw_tile + off)
            xc = jnp.where(lane < valid, xc, jnp.zeros_like(xc))
        xs_ref[0, 0] += jnp.sum(xc.astype(jnp.float32), axis=-1, keepdims=True)

    n_full = hw_tile // hw_chunk
    tail = hw_tile - n_full * hw_chunk
    if n_full <= 1 and tail == 0:
        do_chunk(0, hw_tile)
    else:
        def body(i, carry):
            do_chunk(pl.multiple_of(i * hw_chunk, _LANE), hw_chunk)
            return carry

        jax.lax.fori_loop(0, n_full, body, 0)
        if tail:
            do_chunk(n_full * hw_chunk, tail)


@functools.partial(jax.jit, static_argnames=("num_bins",))
def temporal_sampling(x, embeddings, num_bins=-1):
    """JAX/Pallas equivalent of TemporalSampling.forward (drop_bins=False).

    x          : [N, C, T, H, W]  (any float dtype; bf16 halves HBM traffic)
    embeddings : [N, K, T]
    returns (output [N, C, B, H, W], mask [N, B])
    """
    N, C, T, H, W = x.shape
    B = T if num_bins == -1 else num_bins
    HW = H * W

    emb = embeddings.astype(jnp.float32)

    # ---- distance function: cumulative L2 between consecutive embeddings ----
    diffs = emb[:, :, 1:] - emb[:, :, :-1]                        # [N, K, T-1]
    step = jnp.sqrt(jnp.sum(diffs * diffs, axis=1))               # [N, T-1]
    dist = jnp.concatenate(
        [jnp.zeros((N, 1), jnp.float32), jnp.cumsum(step, axis=1)], axis=1
    )                                                             # [N, T]

    # ---- scale so that max distance == 2 * num_bins (as in the torch code) ----
    maxd = jnp.max(dist, axis=1, keepdims=True)                   # [N, 1]
    maxd = jnp.where(maxd > 0, maxd, 1.0)                         # avoid NaN/Inf
    dist = dist * (2.0 * B / maxd)                                # max == 2B

    # ---- Gaussian sampling weights: bin_size == 2, mu_b == 2b + 1 ------------
    mu = 2.0 * jnp.arange(B, dtype=jnp.float32) + 1.0             # [B]
    z = (dist[:, None, :] - mu[None, :, None]) * 0.5              # [N, B, T]
    weights_f32 = jnp.exp(-0.5 * z * z)                           # [N, B, T]

    # ---- tiling, generation-aware VMEM budgets --------------------------------
    vmem_limit, tile_budget = _derive_budgets()
    itemsize = jnp.dtype(x.dtype).itemsize
    cb, hw_tile = _choose_tiles(C, T, B, HW, itemsize, tile_budget)
    bt, bb = cb * T, cb * B
    n_j = pl.cdiv(HW, hw_tile)
    needs_mask = (HW % hw_tile) != 0
    hw_chunk = _choose_hw_chunk(bb, hw_tile)

    # Block-diagonal weights: cb copies of W[n] along the diagonal, so one MXU
    # matmul handles the whole channel block at full contraction depth.
    eye = jnp.eye(cb, dtype=jnp.float32)
    w_bd = jnp.einsum("ij,nbt->nibjt", eye, weights_f32).reshape(N, bb, bt)
    w_bd = w_bd.astype(x.dtype)

    x_r = x.reshape(N, C // cb, bt, HW)                           # free reshape

    x_tile_bytes = bt * hw_tile * itemsize
    n_steps = N * (C // cb) * n_j
    deep_buffer = (x_tile_bytes < (1 << 20)) and (n_steps >= 4)

    kernel = functools.partial(
        _temporal_sampling_kernel,
        hw_tile=hw_tile, hw_chunk=hw_chunk, hw_total=HW, needs_mask=needs_mask)

    out_r, xsum = pl.pallas_call(
        kernel,
        out_shape=(
            jax.ShapeDtypeStruct((N, C // cb, bb, HW), x.dtype),
            jax.ShapeDtypeStruct((N, C // cb, bt, 1), jnp.float32),
        ),
        grid_spec=pltpu.PrefetchScalarGridSpec(
            num_scalar_prefetch=0,
            grid=(N, C // cb, n_j),
            in_specs=[
                pl.BlockSpec((1, bb, bt), lambda n, c, j: (n, 0, 0)),
                _x_block_spec((1, 1, bt, hw_tile), lambda n, c, j: (n, c, 0, j),
                              deep_buffer),
            ],
            out_specs=[
                pl.BlockSpec((1, 1, bb, hw_tile), lambda n, c, j: (n, c, 0, j)),
                pl.BlockSpec((1, 1, bt, 1), lambda n, c, j: (n, c, 0, 0)),
            ],
        ),
        compiler_params=pltpu.CompilerParams(
            # xsum is revisited only across j -> n and channel-block are parallel
            # (both v7x TensorCores get work even when N == 1).
            dimension_semantics=("parallel", "parallel", "arbitrary"),
            vmem_limit_bytes=vmem_limit,
        ),
    )(w_bd, x_r)                                 # [N, C//cb, cb*B, HW], [N, C//cb, cb*T, 1]

    # mask[n,b] = sum_f out[n,b,f] != 0 == (W[n] @ sum_{c,hw} x[n,:,t]) != 0 ; f32 path.
    xsum_t = jnp.sum(xsum.reshape(N, C // cb, cb, T), axis=(1, 2))         # [N, T]
    mask = jnp.einsum("nbt,nt->nb", weights_f32, xsum_t) != 0              # [N, B]

    output = out_r.reshape(N, C, B, H, W)                                  # free reshape
    return output, mask


def _reference(x, embeddings, num_bins=-1):
    """Pure-JAX reference of the same forward math (for a sanity check)."""
    N, C, T, H, W = x.shape
    B = T if num_bins == -1 else num_bins
    e = embeddings.astype(jnp.float32)
    d = jnp.concatenate(
        [jnp.zeros((N, 1), jnp.float32),
         jnp.cumsum(jnp.sqrt(jnp.sum((e[:, :, 1:] - e[:, :, :-1]) ** 2, axis=1)), axis=1)],
        axis=1)
    m = jnp.max(d, axis=1, keepdims=True)
    m = jnp.where(m > 0, m, 1.0)
    d = d * (2.0 * B / m)
    mu = 2.0 * jnp.arange(B, dtype=jnp.float32) + 1.0
    w = jnp.exp(-0.5 * ((d[:, None, :] - mu[None, :, None]) * 0.5) ** 2)
    xf = jnp.transpose(x.astype(jnp.float32), (0, 2, 1, 3, 4)).reshape(N, T, C * H * W)
    of = jnp.einsum("nbt,ntf->nbf", w, xf, precision=jax.lax.Precision.HIGHEST)
    mask = jnp.sum(of, axis=2) != 0
    out = jnp.transpose(of.reshape(N, B, C, H, W), (0, 2, 1, 3, 4))
    return out.astype(x.dtype), mask


if __name__ == "__main__":
    key = jax.random.PRNGKey(0)
    k_x, k_e = jax.random.split(key)

    N, C, T, H, W = 2, 4, 8, 16, 16
    K = 32

    x = jax.random.normal(k_x, (N, C, T, H, W), dtype=jnp.float32)
    embeddings = jax.random.normal(k_e, (N, K, T), dtype=jnp.float32)

    output, mask = temporal_sampling(x, embeddings, num_bins=-1)
    jax.block_until_ready((output, mask))

    assert output.shape == (N, C, T, H, W)   # num_bins == T here
    assert mask.shape == (N, T)

    ref_out, ref_mask = _reference(x, embeddings, num_bins=-1)
    assert jnp.allclose(output, ref_out, atol=1e-3, rtol=1e-3)
    assert bool(jnp.all(mask == ref_mask))

    print("KERNEL_OK")
</pallas_src>

<mosaic_0001>
module attributes {stable_mosaic.version = 11 : i64} {
  func.func @_temporal_sampling_kernel(%arg0: i32, %arg1: i32, %arg2: i32, %arg3: memref<1x32x32xf32, #tpu.memory_space<vmem>>, %arg4: memref<1x1x32x256xf32, #tpu.memory_space<vmem>>, %arg5: memref<1x1x32x256xf32, #tpu.memory_space<vmem>>, %arg6: memref<1x1x32x1xf32, #tpu.memory_space<vmem>>) attributes {dimension_semantics = [#tpu.dimension_semantics<parallel>, #tpu.dimension_semantics<parallel>, #tpu.dimension_semantics<arbitrary>], iteration_bounds = array<i64: 2, 1, 1>, scalar_prefetch = 0 : i64, scratch_operands = 0 : i64, tpu.core_type = #tpu.core_type<tc>, window_params = [{transform_indices = @transform_0, window_bounds = array<i64: 1, 32, 32>}, {transform_indices = @transform_1, window_bounds = array<i64: 1, 1, 32, 256>}, {transform_indices = @transform_2, window_bounds = array<i64: 1, 1, 32, 256>}, {transform_indices = @transform_3, window_bounds = array<i64: 1, 1, 32, 1>}]} {
    %c0_i32 = arith.constant 0 : i32
    %0 = arith.cmpi eq, %arg2, %c0_i32 : i32
    %1 = arith.extui %0 : i1 to i32
    %c0_i32_0 = arith.constant 0 : i32
    %2 = arith.cmpi ne, %1, %c0_i32_0 : i32
    scf.if %2 {
      %cst_20 = arith.constant 0.000000e+00 : f32
      %19 = vector.broadcast %cst_20 : f32 to vector<1x1x32x1xf32>
      %c0_21 = arith.constant 0 : index
      %c0_22 = arith.constant 0 : index
      %c0_23 = arith.constant 0 : index
      %c0_24 = arith.constant 0 : index
      %20 = vector.load %arg6[%c0_21, %c0_22, %c0_23, %c0_24] : memref<1x1x32x1xf32, #tpu.memory_space<vmem>>, vector<1x1x32x1xf32>
      tpu.vector_store %arg6[%c0_21, %c0_22, %c0_23, %c0_24], %19 {strides = array<i32>} : memref<1x1x32x1xf32, #tpu.memory_space<vmem>>, vector<1x1x32x1xf32>,
    } else {
    }
    %c0 = arith.constant 0 : index
    %c0_1 = arith.constant 0 : index
    %c0_2 = arith.constant 0 : index
    %3 = vector.load %arg3[%c0, %c0_1, %c0_2] : memref<1x32x32xf32, #tpu.memory_space<vmem>>, vector<1x32x32xf32>
    %4 = vector.shape_cast %3 : vector<1x32x32xf32> to vector<32x32xf32>
    %c0_3 = arith.constant 0 : index
    %c0_4 = arith.constant 0 : index
    %c0_5 = arith.constant 0 : index
    %c0_6 = arith.constant 0 : index
    %5 = vector.load %arg4[%c0_3, %c0_4, %c0_5, %c0_6] : memref<1x1x32x256xf32, #tpu.memory_space<vmem>>, vector<1x1x32x256xf32>
    %6 = vector.shape_cast %5 : vector<1x1x32x256xf32> to vector<32x256xf32>
    %cst = arith.constant dense<0.000000e+00> : vector<32x256xf32>
    %7 = tpu.matmul %4, %6, %cst {dimension_numbers = #tpu.dot_dimension_numbers<[1], [0], [0], [1], [0, 0, 1, 1], [], []>} : vector<32x32xf32>, vector<32x256xf32>, vector<32x256xf32> -> vector<32x256xf32>
    %c0_7 = arith.constant 0 : index
    %c0_8 = arith.constant 0 : index
    %c0_9 = arith.constant 0 : index
    %c0_10 = arith.constant 0 : index
    %8 = vector.load %arg5[%c0_7, %c0_8, %c0_9, %c0_10] : memref<1x1x32x256xf32, #tpu.memory_space<vmem>>, vector<1x1x32x256xf32>
    %9 = vector.shape_cast %8 : vector<1x1x32x256xf32> to vector<32x256xf32>
    %10 = vector.shape_cast %7 : vector<32x256xf32> to vector<1x1x32x256xf32>
    tpu.vector_store %arg5[%c0_7, %c0_8, %c0_9, %c0_10], %10 {strides = array<i32>} : memref<1x1x32x256xf32, #tpu.memory_space<vmem>>, vector<1x1x32x256xf32>,
    %c0_11 = arith.constant 0 : index
    %c0_12 = arith.constant 0 : index
    %c0_13 = arith.constant 0 : index
    %c0_14 = arith.constant 0 : index
    %11 = vector.load %arg6[%c0_11, %c0_12, %c0_13, %c0_14] : memref<1x1x32x1xf32, #tpu.memory_space<vmem>>, vector<1x1x32x1xf32>
    %12 = vector.shape_cast %11 : vector<1x1x32x1xf32> to vector<32x1xf32>
    %cst_15 = arith.constant dense<0.000000e+00> : vector<32xf32>
    %13 = vector.multi_reduction <add>, %6, %cst_15 [1] : vector<32x256xf32> to vector<32xf32>
    %14 = vector.shape_cast %13 : vector<32xf32> to vector<32x1xf32>
    %15 = arith.addf %12, %14 : vector<32x1xf32>
    %c0_16 = arith.constant 0 : index
    %c0_17 = arith.constant 0 : index
    %c0_18 = arith.constant 0 : index
    %c0_19 = arith.constant 0 : index
    %16 = vector.load %arg6[%c0_16, %c0_17, %c0_18, %c0_19] : memref<1x1x32x1xf32, #tpu.memory_space<vmem>>, vector<1x1x32x1xf32>
    %17 = vector.shape_cast %16 : vector<1x1x32x1xf32> to vector<32x1xf32>
    %18 = vector.shape_cast %15 : vector<32x1xf32> to vector<1x1x32x1xf32>
    tpu.vector_store %arg6[%c0_16, %c0_17, %c0_18, %c0_19], %18 {strides = array<i32>} : memref<1x1x32x1xf32, #tpu.memory_space<vmem>>, vector<1x1x32x1xf32>,
    return
  }
  func.func @transform_0(%arg0: i32, %arg1: i32, %arg2: i32) -> (i32, i32, i32) {
    %c0_i32 = arith.constant 0 : i32
    %c0_i32_0 = arith.constant 0 : i32
    %c0_i32_1 = arith.constant 0 : i32
    return %arg0, %c0_i32, %c0_i32_0 : i32, i32, i32
  }
  func.func @transform_1(%arg0: i32, %arg1: i32, %arg2: i32) -> (i32, i32, i32, i32) {
    %c0_i32 = arith.constant 0 : i32
    %c0_i32_0 = arith.constant 0 : i32
    return %arg0, %arg1, %c0_i32, %arg2 : i32, i32, i32, i32
  }
  func.func @transform_2(%arg0: i32, %arg1: i32, %arg2: i32) -> (i32, i32, i32, i32) {
    %c0_i32 = arith.constant 0 : i32
    %c0_i32_0 = arith.constant 0 : i32
    return %arg0, %arg1, %c0_i32, %arg2 : i32, i32, i32, i32
  }
  func.func @transform_3(%arg0: i32, %arg1: i32, %arg2: i32) -> (i32, i32, i32, i32) {
    %c0_i32 = arith.constant 0 : i32
    %c0_i32_0 = arith.constant 0 : i32
    %c0_i32_1 = arith.constant 0 : i32
    return %arg0, %arg1, %c0_i32, %c0_i32_0 : i32, i32, i32, i32
  }
}

</mosaic_0001>

<llo_original>
// kernel: temporal_sampling.1
$region0: #{temporal_sampling.1}
  #allocation0 [shape = 'u32[]', space=smem, size = 0x4, offset = 0x4, fixed_abs, tag = 'smem constant byte address 0x4 - core index']
  #allocation1 [shape = 'u32[72,128]{1,0:T(1,128)}', space=vmem, size = 0x9000, scoped, tag = 'internal scratch']
  %s0 = inlined_call_operand.vmem [shape: f32[2,32,32], index: 0, kind: input, shape index: {}]
  %s1 = inlined_call_operand.vmem [shape: f32[2,1,32,256], index: 1, kind: input, shape index: {}]
  %s2 = inlined_call_operand.vmem [shape: f32[2,1,32,256], index: 2, kind: output, shape index: {0}]
  %s3 = inlined_call_operand.vmem [shape: f32[2,1,32,1], index: 3, kind: output, shape index: {1}]
  %4 = xla_tuple %s2, %s3
  %s5 = sld [smem:[#allocation0]]
  $region53: #{temporal_sampling.1} parent=0
    _
  %s7 = ssub.s32 1, %s5
  %s8 = scalar_select 0, %s7, %s5
  loop: start=0, step=1, limit=4
  $region2: #{temporal_sampling.1} parent=0 // loop_pre_header
    _
  $region3: #{temporal_sampling.1} parent=0 // loop_header
    %s10 = sphi 0, %s14
    %p11 = scmp.ge.s32.totalorder %s10, 4
    %s17 = sphi 0, %s36
    %s18 = sphi 0, %s32
    %s19 = sphi 0, %s28
    %s20 = sphi 0, %s17
    %s21 = sphi 0, %s18
    %s22 = sphi 0, %s19
    %s23 = sphi 0, %s20
    %s24 = sphi 0, %s21
    %s25 = sphi 0, %s22
    %s39 = sphi 0, %s41
    %s42 = sphi 0, %s39
    %s43 = sphi 0, %s42
    %s59 = sphi 0, %s43
    %s69 = sphi 0, %s71
    %s72 = sphi 0, %s69
    %s73 = sphi 0, %s72
    %s89 = sphi 0, %s73
    %s99 = sphi 0, %s101
    %s102 = sphi 0, %s99
    %s103 = sphi 0, %s102
    %s119 = sphi 0, %s103
    %s127 = sphi 0, %s129
    %s130 = sphi 0, %s127
    %s131 = sphi 0, %s130
    %s147 = sphi 0, %s131
  $region4: #{temporal_sampling.1} parent=0 // loop_header_branch
    %13 = sbr.rel (%p11) target = $region8
  $region5: #{temporal_sampling.1} parent=0 // loop_body
    %s15 = ssub.s32 %s10, 1
    %s16 = ssub.s32 %s10, 2
    %s26 = sadd.s32 1, %s19
    %p27 = scmp.ge.s32.totalorder %s26, 1
    %s28 = scalar_select %p27, 0, %s26
    %s29 = sadd.s32 1, %s18
    %s30 = scalar_select %p27, %s29, %s18
    %p31 = scmp.ge.s32.totalorder %s30, 1
    %s32 = scalar_select %p31, 0, %s30
    %s33 = sadd.s32 1, %s17
    %s34 = scalar_select %p31, %s33, %s17
    %p35 = scmp.ge.s32.totalorder %s34, 2
    %s36 = scalar_select %p35, 0, %s34
    %s37 = ssub.s32 %s17, %s36
    %p38 = scmp.eq.s32.totalorder %s37, 0
    %s40 = sadd.s32 %s39, 1
    %s41 = scalar_select %p38, %s39, %s40
    %p44 = pneg %p38
    %p45 = scmp.eq.s32.totalorder %s10, 1
    %p46 = por %p44, %p45
    %p47 = scmp.ne.s32.totalorder %s39, %s42
    %p48 = scmp.eq.s32.totalorder %s10, 0
    %p49 = por %p47, %p48
    %p50 = scmp.ne.s32.totalorder %s39, %s42
    %p51 = scmp.eq.s32.totalorder %s15, 1
    %p52 = por %p50, %p51
    %p53 = scmp.ne.s32.totalorder %s42, %s43
    %p54 = scmp.eq.s32.totalorder %s15, 0
    %p55 = por %p53, %p54
    %p56 = scmp.ne.s32.totalorder %s42, %s43
    %p57 = scmp.eq.s32.totalorder %s16, 1
    %p58 = por %p56, %p57
    %p60 = scmp.ne.s32.totalorder %s43, %s59
    %p61 = scmp.eq.s32.totalorder %s16, 0
    %p62 = por %p60, %p61
    %s63 = ssub.s32 %s17, %s36
    %s64 = ssub.s32 %s18, %s32
    %s65 = sor.u32 %s63, %s64
    %s66 = ssub.s32 %s19, %s28
    %s67 = sor.u32 %s65, %s66
    %p68 = scmp.eq.s32.totalorder %s67, 0
    %s70 = sadd.s32 %s69, 1
    %s71 = scalar_select %p68, %s69, %s70
    %p74 = pneg %p68
    %p75 = scmp.eq.s32.totalorder %s10, 1
    %p76 = por %p74, %p75
    %p77 = scmp.ne.s32.totalorder %s69, %s72
    %p78 = scmp.eq.s32.totalorder %s10, 0
    %p79 = por %p77, %p78
    %p80 = scmp.ne.s32.totalorder %s69, %s72
    %p81 = scmp.eq.s32.totalorder %s15, 1
    %p82 = por %p80, %p81
    %p83 = scmp.ne.s32.totalorder %s72, %s73
    %p84 = scmp.eq.s32.totalorder %s15, 0
    %p85 = por %p83, %p84
    %p86 = scmp.ne.s32.totalorder %s72, %s73
    %p87 = scmp.eq.s32.totalorder %s16, 1
    %p88 = por %p86, %p87
    %p90 = scmp.ne.s32.totalorder %s73, %s89
    %p91 = scmp.eq.s32.totalorder %s16, 0
    %p92 = por %p90, %p91
    %s93 = ssub.s32 %s17, %s36
    %s94 = ssub.s32 %s18, %s32
    %s95 = sor.u32 %s93, %s94
    %s96 = ssub.s32 %s19, %s28
    %s97 = sor.u32 %s95, %s96
    %p98 = scmp.eq.s32.totalorder %s97, 0
    %s100 = sadd.s32 %s99, 1
    %s101 = scalar_select %p98, %s99, %s100
    %p104 = pneg %p98
    %p105 = scmp.eq.s32.totalorder %s10, 1
    %p106 = por %p104, %p105
    %p107 = scmp.ne.s32.totalorder %s99, %s102
    %p108 = scmp.eq.s32.totalorder %s10, 0
    %p109 = por %p107, %p108
    %p110 = scmp.ne.s32.totalorder %s99, %s102
    %p111 = scmp.eq.s32.totalorder %s15, 1
    %p112 = por %p110, %p111
    %p113 = scmp.ne.s32.totalorder %s102, %s103
    %p114 = scmp.eq.s32.totalorder %s15, 0
    %p115 = por %p113, %p114
    %p116 = scmp.ne.s32.totalorder %s102, %s103
    %p117 = scmp.eq.s32.totalorder %s16, 1
    %p118 = por %p116, %p117
    %p120 = scmp.ne.s32.totalorder %s103, %s119
    %p121 = scmp.eq.s32.totalorder %s16, 0
    %p122 = por %p120, %p121
    %s123 = ssub.s32 %s17, %s36
    %s124 = ssub.s32 %s18, %s32
    %s125 = sor.u32 %s123, %s124
    %p126 = scmp.eq.s32.totalorder %s125, 0
    %s128 = sadd.s32 %s127, 1
    %s129 = scalar_select %p126, %s127, %s128
    %p132 = pneg %p126
    %p133 = scmp.eq.s32.totalorder %s10, 1
    %p134 = por %p132, %p133
    %p135 = scmp.ne.s32.totalorder %s127, %s130
    %p136 = scmp.eq.s32.totalorder %s10, 0
    %p137 = por %p135, %p136
    %p138 = scmp.ne.s32.totalorder %s127, %s130
    %p139 = scmp.eq.s32.totalorder %s15, 1
    %p140 = por %p138, %p139
    %p141 = scmp.ne.s32.totalorder %s130, %s131
    %p142 = scmp.eq.s32.totalorder %s15, 0
    %p143 = por %p141, %p142
    %p144 = scmp.ne.s32.totalorder %s130, %s131
    %p145 = scmp.eq.s32.totalorder %s16, 1
    %p146 = por %p144, %p145
    %p148 = scmp.ne.s32.totalorder %s131, %s147
    %p149 = scmp.eq.s32.totalorder %s16, 0
    %p150 = por %p148, %p149
    %p151 = scmp.le.s32.totalorder 1, %s10
    %p152 = scmp.lt.s32.totalorder %s10, 3
    %p153 = pnand %p151, %p152
    %p154 = pneg %p153
    // Predicated region
    $region9: #{temporal_sampling.1} parent=5 // pred_check
      _
    $region10: #{temporal_sampling.1} parent=5 // pred_check_branch
      %156 = sbr.rel (%p153) target = $region12
    $region11: #{temporal_sampling.1} parent=5 // pred_region
      %s157 = ssub.s32 %s10, 1
    $region12: #{temporal_sampling.1} parent=5 // pred_fallthru
      _
    %p158 = scmp.lt.s32.totalorder %s10, 2
    // Predicated region
    $region13: #{temporal_sampling.1} parent=5 // pred_check
      %p159 = pneg %p158
    $region14: #{temporal_sampling.1} parent=5 // pred_check_branch
      %161 = sbr.rel (%p159) target = $region16
    $region15: #{temporal_sampling.1} parent=5 // pred_region
      // Predicated region
      $region17: #{temporal_sampling.1} parent=15 // pred_check
        %p162 = pneg %p49
      $region18: #{temporal_sampling.1} parent=15 // pred_check_branch
        %164 = sbr.rel (%p162) target = $region20
      $region19: #{temporal_sampling.1} parent=15 // pred_region
        %p165 = scmp.lt.s32.totalorder %s17, 1
        %s166 = scalar_select %p165, %s17, 1
        %s167 = smul.addr %s166, 4
        %s168 = smul.addr %s167, 8
        %s169 = scalar_lea.vmem %s0, %s168
      $region20: #{temporal_sampling.1} parent=15 // pred_fallthru
        _
      // Predicated region
      $region21: #{temporal_sampling.1} parent=15 // pred_check
        %p170 = pneg %p79
      $region22: #{temporal_sampling.1} parent=15 // pred_check_branch
        %172 = sbr.rel (%p170) target = $region24
      $region23: #{temporal_sampling.1} parent=15 // pred_region
        %s173 = smul.u32 2, %s19
        %p174 = scmp.lt.s32.totalorder %s17, 1
        %s175 = scalar_select %p174, %s17, 1
        %p176 = scmp.lt.s32.totalorder %s18, 0
        %s177 = scalar_select %p176, %s18, 0
        %p178 = scmp.lt.s32.totalorder %s173, 1
        %s179 = scalar_select %p178, %s173, 1
        %s180 = smul.addr %s177, 8
        %s181 = sadd.s32 %s179, %s180
        %s182 = smul.addr %s175, 8
        %s183 = sadd.s32 %s181, %s182
        %s184 = smul.addr %s183, 8
        %s185 = scalar_lea.vmem %s1, %s184
        %s186 = smul.u32 2, %s19
      $region24: #{temporal_sampling.1} parent=15 // pred_fallthru
        _
    $region16: #{temporal_sampling.1} parent=5 // pred_fallthru
      _
    %p187 = scmp.le.s32.totalorder 1, %s10
    %p188 = scmp.lt.s32.totalorder %s10, 3
    %p189 = pnand %p187, %p188
    %p190 = pneg %p189
    // Predicated region
    $region25: #{temporal_sampling.1} parent=5 // pred_check
      _
    $region26: #{temporal_sampling.1} parent=5 // pred_check_branch
      %192 = sbr.rel (%p189) target = $region28
    $region27: #{temporal_sampling.1} parent=5 // pred_region
      %s193 = ssub.s32 %s10, 1
      %p194 = scmp.lt.s32.totalorder %s20, 1
      %s195 = scalar_select %p194, %s20, 1
      %s196 = smul.addr %s195, 4
      %s197 = smul.addr %s196, 8
      %s198 = scalar_lea.vmem %s0, %s197
      %p199 = pneg %p55
      %p200 = pneg %p52
      %s201 = smul.u32 2, %s22
      %p202 = scmp.lt.s32.totalorder %s20, 1
      %s203 = scalar_select %p202, %s20, 1
      %p204 = scmp.lt.s32.totalorder %s21, 0
      %s205 = scalar_select %p204, %s21, 0
      %p206 = scmp.lt.s32.totalorder %s201, 1
      %s207 = scalar_select %p206, %s201, 1
      %s208 = smul.addr %s205, 8
      %s209 = sadd.s32 %s207, %s208
      %s210 = smul.addr %s203, 8
      %s211 = sadd.s32 %s209, %s210
      %s212 = smul.addr %s211, 8
      %s213 = scalar_lea.vmem %s1, %s212
      %p214 = pneg %p85
      %p215 = pneg %p82
      %p216 = pneg %p115
      %p217 = pneg %p112
      %s218 = smul.u32 2, %s22
      %p219 = scmp.lt.s32.totalorder %s20, 1
      %s220 = scalar_select %p219, %s20, 1
      %p221 = scmp.lt.s32.totalorder %s21, 0
      %s222 = scalar_select %p221, %s21, 0
      %p223 = scmp.lt.s32.totalorder %s218, 1
      %s224 = scalar_select %p223, %s218, 1
      %s225 = smul.addr %s222, 8
      %s226 = sadd.s32 %s224, %s225
      %s227 = smul.addr %s220, 8
      %s228 = sadd.s32 %s226, %s227
      %s229 = smul.addr %s228, 8
      %s230 = scalar_lea.vmem %s2, %s229
      %p231 = pneg %p143
      %p232 = pneg %p140
      %p233 = scmp.lt.s32.totalorder %s20, 1
      %s234 = scalar_select %p233, %s20, 1
      %p235 = scmp.lt.s32.totalorder %s21, 0
      %s236 = scalar_select %p235, %s21, 0
      %s237 = smul.addr %s236, 4
      %s238 = smul.addr %s234, 4
      %s239 = sadd.s32 %s237, %s238
      %s240 = smul.addr %s239, 8
      %s241 = scalar_lea.vmem %s3, %s240
      %p242 = scmp.lt.s32.totalorder %s20, 1
      %s243 = scalar_select %p242, %s20, 1
      %s244 = smul.addr %s243, 4
      %s245 = smul.addr %s244, 8
      %s246 = scalar_lea.vmem %s0, %s245
      %s247 = smul.u32 2, %s22
      %p248 = scmp.lt.s32.totalorder %s20, 1
      %s249 = scalar_select %p248, %s20, 1
      %p250 = scmp.lt.s32.totalorder %s21, 0
      %s251 = scalar_select %p250, %s21, 0
      %p252 = scmp.lt.s32.totalorder %s247, 1
      %s253 = scalar_select %p252, %s247, 1
      %s254 = smul.addr %s251, 8
      %s255 = sadd.s32 %s253, %s254
      %s256 = smul.addr %s249, 8
      %s257 = sadd.s32 %s255, %s256
      %s258 = smul.addr %s257, 8
      %s259 = scalar_lea.vmem %s1, %s258
      %s260 = smul.u32 2, %s22
      %s261 = smul.u32 2, %s22
      %p262 = scmp.lt.s32.totalorder %s20, 1
      %s263 = scalar_select %p262, %s20, 1
      %p264 = scmp.lt.s32.totalorder %s21, 0
      %s265 = scalar_select %p264, %s21, 0
      %p266 = scmp.lt.s32.totalorder %s261, 1
      %s267 = scalar_select %p266, %s261, 1
      %s268 = smul.addr %s265, 8
      %s269 = sadd.s32 %s267, %s268
      %s270 = smul.addr %s263, 8
      %s271 = sadd.s32 %s269, %s270
      %s272 = smul.addr %s271, 8
      %s273 = scalar_lea.vmem %s2, %s272
      %s274 = smul.u32 2, %s22
      %p275 = scmp.lt.s32.totalorder %s20, 1
      %s276 = scalar_select %p275, %s20, 1
      %p277 = scmp.lt.s32.totalorder %s21, 0
      %s278 = scalar_select %p277, %s21, 0
      %s279 = smul.addr %s278, 4
      %s280 = smul.addr %s276, 4
      %s281 = sadd.s32 %s279, %s280
      %s282 = smul.addr %s281, 8
      %s283 = scalar_lea.vmem %s3, %s282
      %p284 = scmp.eq.s32.totalorder %s22, 0
      // Predicated region
      $region29: #{temporal_sampling.1} parent=27 // pred_check
        %p285 = pneg %p284
      $region30: #{temporal_sampling.1} parent=27 // pred_check_branch
        %287 = sbr.rel (%p285) target = $region32
      $region31: #{temporal_sampling.1} parent=27 // pred_region
        %vm288 = vcmask 7168
        %289 = vst.msk [vmem:[%s283] sm:$0xff] %vm288, 0.0
        %290 = vst.msk [vmem:[%s283 + $0x8] sm:$0xff] %vm288, 0.0
        %291 = vst.msk [vmem:[%s283 + $0x10] sm:$0xff] %vm288, 0.0
        %292 = vst.msk [vmem:[%s283 + $0x18] sm:$0xff] %vm288, 0.0
      $region32: #{temporal_sampling.1} parent=27 // pred_fallthru
        _
      %v293 = vld [vmem:[%s246] sm:$0xff]
      %v294 = vld [vmem:[%s246 + $0x8] sm:$0xff]
      %v295 = vld [vmem:[%s246 + $0x10] sm:$0xff]
      %v296 = vld [vmem:[%s246 + $0x18] sm:$0xff]
      %v297 = vld [vmem:[%s259] sm:$0xff]
      %v298 = vld [vmem:[%s259 + $0x8] sm:$0xff]
      %v299 = vld [vmem:[%s259 + $0x10] sm:$0xff]
      %v300 = vld [vmem:[%s259 + $0x18] sm:$0xff]
      %v301 = vld [vmem:[%s259 + $0x20] sm:$0xff]
      %v302 = vld [vmem:[%s259 + $0x28] sm:$0xff]
      %v303 = vld [vmem:[%s259 + $0x30] sm:$0xff]
      %v304 = vld [vmem:[%s259 + $0x38] sm:$0xff]
      %vm305 = vcmask 261120
      %v307 = vsel %vm305, %v293, 0
      %v310 = vsel %vm305, %v294, 0
      %v313 = vsel %vm305, %v295, 0
      %v316 = vsel %vm305, %v296, 0
      %318 = vmatpush.msra.mxu0 0.0
      %319 = vmatpush.msra.mxu0 0.0
      %320 = vmatpush.msra.mxu0 0.0
      %321 = vmatpush.msra.mxu0 0.0
      %322 = vmatpush.msra.mxu0 0.0
      %323 = vmatpush.msra.mxu0 0.0
      %324 = vmatpush.msra.mxu0 0.0
      %325 = vmatpush.msra.mxu0 0.0
      %326 = vmatpush.msra.mxu0 0.0
      %327 = vmatpush.msra.mxu0 0.0
      %328 = vmatpush.msra.mxu0 0.0
      %329 = vmatpush.msra.mxu0 0.0
      %330 = vmatpush.msra.mxu0 %v303
      %331 = vmatpush.msra.mxu0 %v301
      %332 = vmatpush.msra.mxu0 %v299
      %333 = vmatpush.msra.mxu0 %v297
      %334 = vmatmul.f32.gmra.mxu0 %v307
      %v335 = vpop.f32.mrf.mxu0
      %v336 = vadd.f32 0.0, %v335
      %337 = vmatmul.f32.gmra.mxu0 %v310
      %v338 = vpop.f32.mrf.mxu0
      %v339 = vadd.f32 0.0, %v338
      %340 = vmatmul.f32.gmra.mxu0 %v313
      %v341 = vpop.f32.mrf.mxu0
      %v342 = vadd.f32 0.0, %v341
      %343 = vmatmul.f32.gmra.mxu0 %v316
      %v344 = vpop.f32.mrf.mxu0
      %v345 = vadd.f32 0.0, %v344
      %346 = vdwg.mxu0
      %347 = vmatpush.msra.mxu0 0.0
      %348 = vmatpush.msra.mxu0 0.0
      %349 = vmatpush.msra.mxu0 0.0
      %350 = vmatpush.msra.mxu0 0.0
      %351 = vmatpush.msra.mxu0 0.0
      %352 = vmatpush.msra.mxu0 0.0
      %353 = vmatpush.msra.mxu0 0.0
      %354 = vmatpush.msra.mxu0 0.0
      %355 = vmatpush.msra.mxu0 0.0
      %356 = vmatpush.msra.mxu0 0.0
      %357 = vmatpush.msra.mxu0 0.0
      %358 = vmatpush.msra.mxu0 0.0
      %359 = vmatpush.msra.mxu0 %v304
      %360 = vmatpush.msra.mxu0 %v302
      %361 = vmatpush.msra.mxu0 %v300
      %362 = vmatpush.msra.mxu0 %v298
      %363 = vmatmul.f32.gmra.mxu0 %v307
      %v364 = vpop.f32.mrf.mxu0
      %v365 = vadd.f32 0.0, %v364
      %366 = vmatmul.f32.gmra.mxu0 %v310
      %v367 = vpop.f32.mrf.mxu0
      %v368 = vadd.f32 0.0, %v367
      %369 = vmatmul.f32.gmra.mxu0 %v313
      %v370 = vpop.f32.mrf.mxu0
      %v371 = vadd.f32 0.0, %v370
      %372 = vmatmul.f32.gmra.mxu0 %v316
      %v373 = vpop.f32.mrf.mxu0
      %v374 = vadd.f32 0.0, %v373
      %375 = vdwg.mxu0
      %376 = vst [vmem:[%s273] sm:$0xff] %v336
      %377 = vst [vmem:[%s273 + $0x8] sm:$0xff] %v365
      %378 = vst [vmem:[%s273 + $0x10] sm:$0xff] %v339
      %379 = vst [vmem:[%s273 + $0x18] sm:$0xff] %v368
      %380 = vst [vmem:[%s273 + $0x20] sm:$0xff] %v342
      %381 = vst [vmem:[%s273 + $0x28] sm:$0xff] %v371
      %382 = vst [vmem:[%s273 + $0x30] sm:$0xff] %v345
      %383 = vst [vmem:[%s273 + $0x38] sm:$0xff] %v374
      %v384 = vld [vmem:[%s283] sm:$0xff]
      %v385 = vld [vmem:[%s283 + $0x8] sm:$0xff]
      %v386 = vld [vmem:[%s283 + $0x10] sm:$0xff]
      %v387 = vld [vmem:[%s283 + $0x18] sm:$0xff]
      %v388 = vadd.f32 %v297, %v298
      %389 = vadd.xlane.f32.xlu0 %v388
      %v390 = vpop.xlane.xlu0 %389
      %v391 = vadd.f32 %v299, %v300
      %392 = vadd.xlane.f32.xlu0 %v391
      %v393 = vpop.xlane.xlu0 %392
      %v394 = vadd.f32 %v301, %v302
      %395 = vadd.xlane.f32.xlu0 %v394
      %v396 = vpop.xlane.xlu0 %395
      %v397 = vadd.f32 %v303, %v304
      %398 = vadd.xlane.f32.xlu0 %v397
      %v399 = vpop.xlane.xlu0 %398
      %v400 = vadd.f32 %v384, %v390
      %v401 = vadd.f32 %v385, %v393
      %v402 = vadd.f32 %v386, %v396
      %v403 = vadd.f32 %v387, %v399
      %vm404 = vcmask 7168
      %405 = vst.msk [vmem:[%s283] sm:$0xff] %vm404, %v400
      %406 = vst.msk [vmem:[%s283 + $0x8] sm:$0xff] %vm404, %v401
      %407 = vst.msk [vmem:[%s283 + $0x10] sm:$0xff] %vm404, %v402
      %408 = vst.msk [vmem:[%s283 + $0x18] sm:$0xff] %vm404, %v403
      %s409 = smul.u32 2, %s22
      %p410 = scmp.lt.s32.totalorder %s20, 1
      %s411 = scalar_select %p410, %s20, 1
      %p412 = scmp.lt.s32.totalorder %s21, 0
      %s413 = scalar_select %p412, %s21, 0
      %p414 = scmp.lt.s32.totalorder %s409, 1
      %s415 = scalar_select %p414, %s409, 1
      %s416 = smul.addr %s413, 8
      %s417 = sadd.s32 %s415, %s416
      %s418 = smul.addr %s411, 8
      %s419 = sadd.s32 %s417, %s418
      %s420 = smul.addr %s419, 8
      %s421 = scalar_lea.vmem %s2, %s420
      %p422 = scmp.lt.s32.totalorder %s20, 1
      %s423 = scalar_select %p422, %s20, 1
      %p424 = scmp.lt.s32.totalorder %s21, 0
      %s425 = scalar_select %p424, %s21, 0
      %s426 = smul.addr %s425, 4
      %s427 = smul.addr %s423, 4
      %s428 = sadd.s32 %s426, %s427
      %s429 = smul.addr %s428, 8
      %s430 = scalar_lea.vmem %s3, %s429
      // Predicated region
      $region33: #{temporal_sampling.1} parent=27 // pred_check
        %p431 = pneg %p112
      $region34: #{temporal_sampling.1} parent=27 // pred_check_branch
        %433 = sbr.rel (%p431) target = $region36
      $region35: #{temporal_sampling.1} parent=27 // pred_region
        %s434 = smul.u32 2, %s22
      $region36: #{temporal_sampling.1} parent=27 // pred_fallthru
        _
      // Predicated region
      $region37: #{temporal_sampling.1} parent=27 // pred_check
        %p435 = pneg %p140
      $region38: #{temporal_sampling.1} parent=27 // pred_check_branch
        %437 = sbr.rel (%p435) target = $region40
      $region39: #{temporal_sampling.1} parent=27 // pred_region
        _
      $region40: #{temporal_sampling.1} parent=27 // pred_fallthru
        _
    $region28: #{temporal_sampling.1} parent=5 // pred_fallthru
      _
    %p438 = scmp.le.s32.totalorder 2, %s10
    // Predicated region
    $region41: #{temporal_sampling.1} parent=5 // pred_check
      %p439 = pneg %p438
    $region42: #{temporal_sampling.1} parent=5 // pred_check_branch
      %441 = sbr.rel (%p439) target = $region44
    $region43: #{temporal_sampling.1} parent=5 // pred_region
      %s442 = ssub.s32 %s10, 2
      // Predicated region
      $region45: #{temporal_sampling.1} parent=43 // pred_check
        %p443 = pneg %p118
      $region46: #{temporal_sampling.1} parent=43 // pred_check_branch
        %445 = sbr.rel (%p443) target = $region48
      $region47: #{temporal_sampling.1} parent=43 // pred_region
        %s446 = smul.u32 2, %s25
        %p447 = scmp.lt.s32.totalorder %s23, 1
        %s448 = scalar_select %p447, %s23, 1
        %p449 = scmp.lt.s32.totalorder %s24, 0
        %s450 = scalar_select %p449, %s24, 0
        %p451 = scmp.lt.s32.totalorder %s446, 1
        %s452 = scalar_select %p451, %s446, 1
        %s453 = smul.addr %s450, 8
        %s454 = sadd.s32 %s452, %s453
        %s455 = smul.addr %s448, 8
        %s456 = sadd.s32 %s454, %s455
        %s457 = smul.addr %s456, 8
        %s458 = scalar_lea.vmem %s2, %s457
      $region48: #{temporal_sampling.1} parent=43 // pred_fallthru
        _
      // Predicated region
      $region49: #{temporal_sampling.1} parent=43 // pred_check
        %p459 = pneg %p146
      $region50: #{temporal_sampling.1} parent=43 // pred_check_branch
        %461 = sbr.rel (%p459) target = $region52
      $region51: #{temporal_sampling.1} parent=43 // pred_region
        %p462 = scmp.lt.s32.totalorder %s23, 1
        %s463 = scalar_select %p462, %s23, 1
        %p464 = scmp.lt.s32.totalorder %s24, 0
        %s465 = scalar_select %p464, %s24, 0
        %s466 = smul.addr %s465, 4
        %s467 = smul.addr %s463, 4
        %s468 = sadd.s32 %s466, %s467
        %s469 = smul.addr %s468, 8
        %s470 = scalar_lea.vmem %s3, %s469
      $region52: #{temporal_sampling.1} parent=43 // pred_fallthru
        _
    $region44: #{temporal_sampling.1} parent=5 // pred_fallthru
      _
  $region6: #{temporal_sampling.1} parent=0 // loop_footer
    %s14 = sadd.s32 1, %s10
  $region7: #{temporal_sampling.1} parent=0 // loop_footer_branch
    %9 = sbr.rel target = $region3
  $region8: #{temporal_sampling.1} parent=0 // loop_exit
    _

</llo_original>
